<compile_context>
chip_gen: v5e
topology: v5e:2x2
jax: 0.10.0
libtpu: 0.0.40
codegen_flags: <defaults>
</compile_context>

<pallas_src>
import jax
import jax.numpy as jnp
from jax.experimental import pallas as pl
from jax.experimental.pallas import tpu as pltpu


def _scale_mul_kernel(s_ref, x_ref, o_ref):
    # s_ref: (TR, 1) per-channel scale; x_ref / o_ref: (TR, HW).
    # The (TR, 1) column lane-broadcasts on the VPU; cast handles any dtype
    # promotion (e.g. bf16 * f32 -> f32) explicitly.
    o_ref[...] = (x_ref[...] * s_ref[...]).astype(o_ref.dtype)


def broadcast_mul(x695, x690, *, num_blocks=4):
    """Computes x695 * x690 where x695 is (N, C, 1, 1) and x690 is (N, C, H, W).

    Output dtype follows NumPy/PyTorch promotion of the two operand dtypes.
    """
    n, c, h, w = x690.shape
    assert x695.shape == (n, c, 1, 1)

    rows, hw = n * c, h * w
    out_dtype = jnp.result_type(x695.dtype, x690.dtype)

    # Pure views — no data movement in the wrapper.
    x2d = x690.reshape(rows, hw)   # (N*C, H*W): channels on sublanes
    s2d = x695.reshape(rows, 1)    # (N*C, 1):   lane-broadcast scale

    # 2–4 row blocks give DMA/compute overlap and feed both v7x TensorCores
    # (nb=4 => 2 blocks per core) while keeping per-step overhead negligible.
    # Fall back toward fewer blocks (nb=1 full-extent is always legal) when
    # the row tile would not be a whole multiple of 8 sublanes.
    nb = max(1, int(num_blocks))
    while nb > 1 and not (rows % nb == 0 and (rows // nb) % 8 == 0):
        nb -= 1
    tr = rows // nb

    out2d = pl.pallas_call(
        _scale_mul_kernel,
        out_shape=jax.ShapeDtypeStruct((rows, hw), out_dtype),
        grid_spec=pltpu.PrefetchScalarGridSpec(
            num_scalar_prefetch=0,
            grid=(nb,),
            in_specs=[
                pl.BlockSpec((tr, 1), lambda i: (i, 0)),
                pl.BlockSpec((tr, hw), lambda i: (i, 0)),
            ],
            out_specs=pl.BlockSpec((tr, hw), lambda i: (i, 0)),
        ),
        compiler_params=pltpu.CompilerParams(
            dimension_semantics=("parallel",),
        ),
    )(s2d, x2d)

    return out2d.reshape(n, c, h, w)


if __name__ == "__main__":
    key = jax.random.PRNGKey(0)
    k1, k2, k3, k4, k5, k6 = jax.random.split(key, 6)

    # Small shapes consistent with the module: (N, C, 7, 7) * (N, C, 1, 1).
    x690 = jax.random.normal(k1, (2, 256, 7, 7), dtype=jnp.float32)
    x695 = jax.random.normal(k2, (2, 256, 1, 1), dtype=jnp.float32)
    out = broadcast_mul(x695, x690)
    jax.block_until_ready(out)
    ref = x695 * x690
    assert out.shape == ref.shape and out.dtype == ref.dtype
    assert jnp.allclose(out, ref, atol=1e-6, rtol=1e-6)

    # Awkward (non multiple-of-8) channel count: tiling falls back automatically.
    xb = jax.random.normal(k3, (2, 12, 5, 5), dtype=jnp.float32)
    sb = jax.random.normal(k4, (2, 12, 1, 1), dtype=jnp.float32)
    outb = broadcast_mul(sb, xb)
    jax.block_until_ready(outb)
    assert jnp.allclose(outb, sb * xb, atol=1e-6, rtol=1e-6)

    # Mixed dtypes: bf16 activations * f32 scale promotes to f32 (PyTorch semantics).
    xm = jax.random.normal(k5, (1, 64, 4, 4), dtype=jnp.bfloat16)
    sm = jax.random.normal(k6, (1, 64, 1, 1), dtype=jnp.float32)
    outm = broadcast_mul(sm, xm)
    jax.block_until_ready(outm)
    refm = sm * xm
    assert outm.dtype == refm.dtype
    assert jnp.allclose(outm, refm, atol=1e-5, rtol=1e-5)

    print("KERNEL_OK")
</pallas_src>

<mosaic_0001>
module attributes {stable_mosaic.version = 11 : i64} {
  func.func @_scale_mul_kernel(%arg0: i32, %arg1: memref<128x1xf32, #tpu.memory_space<vmem>>, %arg2: memref<128x49xf32, #tpu.memory_space<vmem>>, %arg3: memref<128x49xf32, #tpu.memory_space<vmem>>) attributes {dimension_semantics = [#tpu.dimension_semantics<parallel>], iteration_bounds = array<i64: 4>, scalar_prefetch = 0 : i64, scratch_operands = 0 : i64, tpu.core_type = #tpu.core_type<tc>, window_params = [{transform_indices = @transform_0, window_bounds = array<i64: 128, 1>}, {transform_indices = @transform_1, window_bounds = array<i64: 128, 49>}, {transform_indices = @transform_2, window_bounds = array<i64: 128, 49>}]} {
    %c0 = arith.constant 0 : index
    %c0_0 = arith.constant 0 : index
    %0 = vector.load %arg2[%c0, %c0_0] : memref<128x49xf32, #tpu.memory_space<vmem>>, vector<128x49xf32>
    %c0_1 = arith.constant 0 : index
    %c0_2 = arith.constant 0 : index
    %1 = vector.load %arg1[%c0_1, %c0_2] : memref<128x1xf32, #tpu.memory_space<vmem>>, vector<128x1xf32>
    %2 = vector.broadcast %1 : vector<128x1xf32> to vector<128x49xf32>
    %3 = arith.mulf %0, %2 : vector<128x49xf32>
    %c0_3 = arith.constant 0 : index
    %c0_4 = arith.constant 0 : index
    %4 = vector.load %arg3[%c0_3, %c0_4] : memref<128x49xf32, #tpu.memory_space<vmem>>, vector<128x49xf32>
    tpu.vector_store %arg3[%c0_3, %c0_4], %3 {strides = array<i32>} : memref<128x49xf32, #tpu.memory_space<vmem>>, vector<128x49xf32>,
    return
  }
  func.func @transform_0(%arg0: i32) -> (i32, i32) {
    %c0_i32 = arith.constant 0 : i32
    %c0_i32_0 = arith.constant 0 : i32
    return %arg0, %c0_i32 : i32, i32
  }
  func.func @transform_1(%arg0: i32) -> (i32, i32) {
    %c0_i32 = arith.constant 0 : i32
    %c0_i32_0 = arith.constant 0 : i32
    return %arg0, %c0_i32 : i32, i32
  }
  func.func @transform_2(%arg0: i32) -> (i32, i32) {
    %c0_i32 = arith.constant 0 : i32
    %c0_i32_0 = arith.constant 0 : i32
    return %arg0, %c0_i32 : i32, i32
  }
}

</mosaic_0001>

<llo_original>
// kernel: tpu_custom_call.1
$region0: #{tpu_custom_call.1}
  #allocation0 [shape = 'u32[]', space=smem, size = 0x4, offset = 0x4, fixed_abs, tag = 'smem constant byte address 0x4 - core index']
  #allocation1 [shape = 'u32[72,128]{1,0:T(1,128)}', space=vmem, size = 0x9000, scoped, tag = 'internal scratch']
  %s0 = inlined_call_operand.vmem [shape: f32[512,1], index: 0, kind: input, shape index: {}]
  %s1 = inlined_call_operand.vmem [shape: f32[512,49], index: 1, kind: input, shape index: {}]
  %s2 = inlined_call_operand.vmem [shape: f32[512,49], index: 2, kind: output, shape index: {}]
  %s3 = sld [smem:[#allocation0]]
  $region41: #{tpu_custom_call.1} parent=0
    _
  %s5 = ssub.s32 1, %s3
  %s6 = scalar_select 0, %s5, %s3
  loop: start=0, step=1, limit=6
  $region2: #{tpu_custom_call.1} parent=0 // loop_pre_header
    _
  $region3: #{tpu_custom_call.1} parent=0 // loop_header
    %s8 = sphi 0, %s12
    %p9 = scmp.ge.s32.totalorder %s8, 6
    %s18 = sphi 0, %s20
    %s21 = sphi 0, %s18
    %s22 = sphi 0, %s21
    %s38 = sphi 0, %s22
    %s44 = sphi 0, %s46
    %s47 = sphi 0, %s44
    %s48 = sphi 0, %s47
    %s64 = sphi 0, %s48
    %s70 = sphi 0, %s72
    %s73 = sphi 0, %s70
    %s74 = sphi 0, %s73
    %s90 = sphi 0, %s74
  $region4: #{tpu_custom_call.1} parent=0 // loop_header_branch
    %11 = sbr.rel (%p9) target = $region8
  $region5: #{tpu_custom_call.1} parent=0 // loop_body
    %s13 = ssub.s32 %s8, 1
    %s14 = ssub.s32 %s8, 2
    %s15 = sadd.s32 %s8, 1
    %s16 = ssub.s32 %s8, %s15
    %p17 = scmp.eq.s32.totalorder %s16, 0
    %s19 = sadd.s32 %s18, 1
    %s20 = scalar_select %p17, %s18, %s19
    %p23 = pneg %p17
    %p24 = scmp.eq.s32.totalorder %s8, 3
    %p25 = por %p23, %p24
    %p26 = scmp.ne.s32.totalorder %s18, %s21
    %p27 = scmp.eq.s32.totalorder %s8, 0
    %p28 = por %p26, %p27
    %p29 = scmp.ne.s32.totalorder %s18, %s21
    %p30 = scmp.eq.s32.totalorder %s13, 3
    %p31 = por %p29, %p30
    %p32 = scmp.ne.s32.totalorder %s21, %s22
    %p33 = scmp.eq.s32.totalorder %s13, 0
    %p34 = por %p32, %p33
    %p35 = scmp.ne.s32.totalorder %s21, %s22
    %p36 = scmp.eq.s32.totalorder %s14, 3
    %p37 = por %p35, %p36
    %p39 = scmp.ne.s32.totalorder %s22, %s38
    %p40 = scmp.eq.s32.totalorder %s14, 0
    %p41 = por %p39, %p40
    %s42 = ssub.s32 %s8, %s15
    %p43 = scmp.eq.s32.totalorder %s42, 0
    %s45 = sadd.s32 %s44, 1
    %s46 = scalar_select %p43, %s44, %s45
    %p49 = pneg %p43
    %p50 = scmp.eq.s32.totalorder %s8, 3
    %p51 = por %p49, %p50
    %p52 = scmp.ne.s32.totalorder %s44, %s47
    %p53 = scmp.eq.s32.totalorder %s8, 0
    %p54 = por %p52, %p53
    %p55 = scmp.ne.s32.totalorder %s44, %s47
    %p56 = scmp.eq.s32.totalorder %s13, 3
    %p57 = por %p55, %p56
    %p58 = scmp.ne.s32.totalorder %s47, %s48
    %p59 = scmp.eq.s32.totalorder %s13, 0
    %p60 = por %p58, %p59
    %p61 = scmp.ne.s32.totalorder %s47, %s48
    %p62 = scmp.eq.s32.totalorder %s14, 3
    %p63 = por %p61, %p62
    %p65 = scmp.ne.s32.totalorder %s48, %s64
    %p66 = scmp.eq.s32.totalorder %s14, 0
    %p67 = por %p65, %p66
    %s68 = ssub.s32 %s8, %s15
    %p69 = scmp.eq.s32.totalorder %s68, 0
    %s71 = sadd.s32 %s70, 1
    %s72 = scalar_select %p69, %s70, %s71
    %p75 = pneg %p69
    %p76 = scmp.eq.s32.totalorder %s8, 3
    %p77 = por %p75, %p76
    %p78 = scmp.ne.s32.totalorder %s70, %s73
    %p79 = scmp.eq.s32.totalorder %s8, 0
    %p80 = por %p78, %p79
    %p81 = scmp.ne.s32.totalorder %s70, %s73
    %p82 = scmp.eq.s32.totalorder %s13, 3
    %p83 = por %p81, %p82
    %p84 = scmp.ne.s32.totalorder %s73, %s74
    %p85 = scmp.eq.s32.totalorder %s13, 0
    %p86 = por %p84, %p85
    %p87 = scmp.ne.s32.totalorder %s73, %s74
    %p88 = scmp.eq.s32.totalorder %s14, 3
    %p89 = por %p87, %p88
    %p91 = scmp.ne.s32.totalorder %s74, %s90
    %p92 = scmp.eq.s32.totalorder %s14, 0
    %p93 = por %p91, %p92
    %p94 = scmp.le.s32.totalorder 1, %s8
    %p95 = scmp.lt.s32.totalorder %s8, 5
    %p96 = pnand %p94, %p95
    %p97 = pneg %p96
    // Predicated region
    $region9: #{tpu_custom_call.1} parent=5 // pred_check
      _
    $region10: #{tpu_custom_call.1} parent=5 // pred_check_branch
      %99 = sbr.rel (%p96) target = $region12
    $region11: #{tpu_custom_call.1} parent=5 // pred_region
      %s100 = ssub.s32 %s8, 1
    $region12: #{tpu_custom_call.1} parent=5 // pred_fallthru
      _
    %p101 = scmp.lt.s32.totalorder %s8, 4
    // Predicated region
    $region13: #{tpu_custom_call.1} parent=5 // pred_check
      %p102 = pneg %p101
    $region14: #{tpu_custom_call.1} parent=5 // pred_check_branch
      %104 = sbr.rel (%p102) target = $region16
    $region15: #{tpu_custom_call.1} parent=5 // pred_region
      // Predicated region
      $region17: #{tpu_custom_call.1} parent=15 // pred_check
        %p105 = pneg %p28
      $region18: #{tpu_custom_call.1} parent=15 // pred_check_branch
        %107 = sbr.rel (%p105) target = $region20
      $region19: #{tpu_custom_call.1} parent=15 // pred_region
        %s108 = smul.u32 16, %s8
        %p109 = scmp.lt.s32.totalorder %s108, 63
        %s110 = scalar_select %p109, %s108, 63
        %s111 = smul.addr %s110, 8
        %s112 = scalar_lea.vmem %s0, %s111
        %s113 = smul.u32 16, %s8
      $region20: #{tpu_custom_call.1} parent=15 // pred_fallthru
        _
      // Predicated region
      $region21: #{tpu_custom_call.1} parent=15 // pred_check
        %p114 = pneg %p54
      $region22: #{tpu_custom_call.1} parent=15 // pred_check_branch
        %116 = sbr.rel (%p114) target = $region24
      $region23: #{tpu_custom_call.1} parent=15 // pred_region
        %s117 = smul.u32 16, %s8
        %p118 = scmp.lt.s32.totalorder %s117, 63
        %s119 = scalar_select %p118, %s117, 63
        %s120 = smul.addr %s119, 8
        %s121 = scalar_lea.vmem %s1, %s120
        %s122 = smul.u32 16, %s8
      $region24: #{tpu_custom_call.1} parent=15 // pred_fallthru
        _
    $region16: #{tpu_custom_call.1} parent=5 // pred_fallthru
      _
    %p123 = scmp.le.s32.totalorder 1, %s8
    %p124 = scmp.lt.s32.totalorder %s8, 5
    %p125 = pnand %p123, %p124
    %p126 = pneg %p125
    // Predicated region
    $region25: #{tpu_custom_call.1} parent=5 // pred_check
      _
    $region26: #{tpu_custom_call.1} parent=5 // pred_check_branch
      %128 = sbr.rel (%p125) target = $region28
    $region27: #{tpu_custom_call.1} parent=5 // pred_region
      %s129 = ssub.s32 %s8, 1
      %s130 = smul.u32 16, %s13
      %p131 = scmp.lt.s32.totalorder %s130, 63
      %s132 = scalar_select %p131, %s130, 63
      %s133 = smul.addr %s132, 8
      %s134 = scalar_lea.vmem %s0, %s133
      %p135 = pneg %p34
      %p136 = pneg %p31
      %s137 = smul.u32 16, %s13
      %p138 = scmp.lt.s32.totalorder %s137, 63
      %s139 = scalar_select %p138, %s137, 63
      %s140 = smul.addr %s139, 8
      %s141 = scalar_lea.vmem %s1, %s140
      %p142 = pneg %p60
      %p143 = pneg %p57
      %p144 = pneg %p86
      %p145 = pneg %p83
      %s146 = smul.u32 16, %s13
      %p147 = scmp.lt.s32.totalorder %s146, 63
      %s148 = scalar_select %p147, %s146, 63
      %s149 = smul.addr %s148, 8
      %s150 = scalar_lea.vmem %s2, %s149
      %s151 = smul.u32 16, %s13
      %p152 = scmp.lt.s32.totalorder %s151, 63
      %s153 = scalar_select %p152, %s151, 63
      %s154 = smul.addr %s153, 8
      %s155 = scalar_lea.vmem %s0, %s154
      %s156 = smul.u32 16, %s13
      %s157 = smul.u32 16, %s13
      %p158 = scmp.lt.s32.totalorder %s157, 63
      %s159 = scalar_select %p158, %s157, 63
      %s160 = smul.addr %s159, 8
      %s161 = scalar_lea.vmem %s1, %s160
      %s162 = smul.u32 16, %s13
      %s163 = smul.u32 16, %s13
      %p164 = scmp.lt.s32.totalorder %s163, 63
      %s165 = scalar_select %p164, %s163, 63
      %s166 = smul.addr %s165, 8
      %s167 = scalar_lea.vmem %s2, %s166
      %s168 = smul.u32 16, %s13
      %v169 = vld [vmem:[%s161] sm:$0xff]
      %v170 = vld [vmem:[%s161 + $0x8] sm:$0xff]
      %v171 = vld [vmem:[%s161 + $0x10] sm:$0xff]
      %v172 = vld [vmem:[%s161 + $0x18] sm:$0xff]
      %v173 = vld [vmem:[%s161 + $0x20] sm:$0xff]
      %v174 = vld [vmem:[%s161 + $0x28] sm:$0xff]
      %v175 = vld [vmem:[%s161 + $0x30] sm:$0xff]
      %v176 = vld [vmem:[%s161 + $0x38] sm:$0xff]
      %v177 = vld [vmem:[%s161 + $0x40] sm:$0xff]
      %v178 = vld [vmem:[%s161 + $0x48] sm:$0xff]
      %v179 = vld [vmem:[%s161 + $0x50] sm:$0xff]
      %v180 = vld [vmem:[%s161 + $0x58] sm:$0xff]
      %v181 = vld [vmem:[%s161 + $0x60] sm:$0xff]
      %v182 = vld [vmem:[%s161 + $0x68] sm:$0xff]
      %v183 = vld [vmem:[%s161 + $0x70] sm:$0xff]
      %v184 = vld [vmem:[%s161 + $0x78] sm:$0xff]
      %v185 = vld [vmem:[%s155] sm:$0xff]
      %v186 = vld [vmem:[%s155 + $0x8] sm:$0xff]
      %v187 = vld [vmem:[%s155 + $0x10] sm:$0xff]
      %v188 = vld [vmem:[%s155 + $0x18] sm:$0xff]
      %v189 = vld [vmem:[%s155 + $0x20] sm:$0xff]
      %v190 = vld [vmem:[%s155 + $0x28] sm:$0xff]
      %v191 = vld [vmem:[%s155 + $0x30] sm:$0xff]
      %v192 = vld [vmem:[%s155 + $0x38] sm:$0xff]
      %v193 = vld [vmem:[%s155 + $0x40] sm:$0xff]
      %v194 = vld [vmem:[%s155 + $0x48] sm:$0xff]
      %v195 = vld [vmem:[%s155 + $0x50] sm:$0xff]
      %v196 = vld [vmem:[%s155 + $0x58] sm:$0xff]
      %v197 = vld [vmem:[%s155 + $0x60] sm:$0xff]
      %v198 = vld [vmem:[%s155 + $0x68] sm:$0xff]
      %v199 = vld [vmem:[%s155 + $0x70] sm:$0xff]
      %v200 = vld [vmem:[%s155 + $0x78] sm:$0xff]
      %202 = vset.pattern.permute.xlu0 0
      %203 = vperm.xlu0 %202, %v185
      %v204 = vpop.permute.xlu0 %203
      %207 = vset.pattern.permute.xlu0 0
      %208 = vperm.xlu0 %207, %v186
      %v209 = vpop.permute.xlu0 %208
      %212 = vset.pattern.permute.xlu0 0
      %213 = vperm.xlu0 %212, %v187
      %v214 = vpop.permute.xlu0 %213
      %217 = vset.pattern.permute.xlu0 0
      %218 = vperm.xlu0 %217, %v188
      %v219 = vpop.permute.xlu0 %218
      %222 = vset.pattern.permute.xlu0 0
      %223 = vperm.xlu0 %222, %v189
      %v224 = vpop.permute.xlu0 %223
      %227 = vset.pattern.permute.xlu0 0
      %228 = vperm.xlu0 %227, %v190
      %v229 = vpop.permute.xlu0 %228
      %232 = vset.pattern.permute.xlu0 0
      %233 = vperm.xlu0 %232, %v191
      %v234 = vpop.permute.xlu0 %233
      %237 = vset.pattern.permute.xlu0 0
      %238 = vperm.xlu0 %237, %v192
      %v239 = vpop.permute.xlu0 %238
      %242 = vset.pattern.permute.xlu0 0
      %243 = vperm.xlu0 %242, %v193
      %v244 = vpop.permute.xlu0 %243
      %247 = vset.pattern.permute.xlu0 0
      %248 = vperm.xlu0 %247, %v194
      %v249 = vpop.permute.xlu0 %248
      %252 = vset.pattern.permute.xlu0 0
      %253 = vperm.xlu0 %252, %v195
      %v254 = vpop.permute.xlu0 %253
      %257 = vset.pattern.permute.xlu0 0
      %258 = vperm.xlu0 %257, %v196
      %v259 = vpop.permute.xlu0 %258
      %262 = vset.pattern.permute.xlu0 0
      %263 = vperm.xlu0 %262, %v197
      %v264 = vpop.permute.xlu0 %263
      %267 = vset.pattern.permute.xlu0 0
      %268 = vperm.xlu0 %267, %v198
      %v269 = vpop.permute.xlu0 %268
      %272 = vset.pattern.permute.xlu0 0
      %273 = vperm.xlu0 %272, %v199
      %v274 = vpop.permute.xlu0 %273
      %277 = vset.pattern.permute.xlu0 0
      %278 = vperm.xlu0 %277, %v200
      %v279 = vpop.permute.xlu0 %278
      %v281 = vmul.f32 %v169, %v204
      %v282 = vmul.f32 %v170, %v209
      %v283 = vmul.f32 %v171, %v214
      %v284 = vmul.f32 %v172, %v219
      %v285 = vmul.f32 %v173, %v224
      %v286 = vmul.f32 %v174, %v229
      %v287 = vmul.f32 %v175, %v234
      %v288 = vmul.f32 %v176, %v239
      %v289 = vmul.f32 %v177, %v244
      %v290 = vmul.f32 %v178, %v249
      %v291 = vmul.f32 %v179, %v254
      %v292 = vmul.f32 %v180, %v259
      %v293 = vmul.f32 %v181, %v264
      %v294 = vmul.f32 %v182, %v269
      %v295 = vmul.f32 %v183, %v274
      %v296 = vmul.f32 %v184, %v279
      %vm297 = vcmask 400384
      %298 = vst.msk [vmem:[%s167] sm:$0xff] %vm297, %v281
      %299 = vst.msk [vmem:[%s167 + $0x8] sm:$0xff] %vm297, %v282
      %300 = vst.msk [vmem:[%s167 + $0x10] sm:$0xff] %vm297, %v283
      %301 = vst.msk [vmem:[%s167 + $0x18] sm:$0xff] %vm297, %v284
      %302 = vst.msk [vmem:[%s167 + $0x20] sm:$0xff] %vm297, %v285
      %303 = vst.msk [vmem:[%s167 + $0x28] sm:$0xff] %vm297, %v286
      %304 = vst.msk [vmem:[%s167 + $0x30] sm:$0xff] %vm297, %v287
      %305 = vst.msk [vmem:[%s167 + $0x38] sm:$0xff] %vm297, %v288
      %306 = vst.msk [vmem:[%s167 + $0x40] sm:$0xff] %vm297, %v289
      %307 = vst.msk [vmem:[%s167 + $0x48] sm:$0xff] %vm297, %v290
      %308 = vst.msk [vmem:[%s167 + $0x50] sm:$0xff] %vm297, %v291
      %309 = vst.msk [vmem:[%s167 + $0x58] sm:$0xff] %vm297, %v292
      %310 = vst.msk [vmem:[%s167 + $0x60] sm:$0xff] %vm297, %v293
      %311 = vst.msk [vmem:[%s167 + $0x68] sm:$0xff] %vm297, %v294
      %312 = vst.msk [vmem:[%s167 + $0x70] sm:$0xff] %vm297, %v295
      %313 = vst.msk [vmem:[%s167 + $0x78] sm:$0xff] %vm297, %v296
      %s314 = smul.u32 16, %s13
      %p315 = scmp.lt.s32.totalorder %s314, 63
      %s316 = scalar_select %p315, %s314, 63
      %s317 = smul.addr %s316, 8
      %s318 = scalar_lea.vmem %s2, %s317
      // Predicated region
      $region29: #{tpu_custom_call.1} parent=27 // pred_check
        %p319 = pneg %p83
      $region30: #{tpu_custom_call.1} parent=27 // pred_check_branch
        %321 = sbr.rel (%p319) target = $region32
      $region31: #{tpu_custom_call.1} parent=27 // pred_region
        %s322 = smul.u32 16, %s13
      $region32: #{tpu_custom_call.1} parent=27 // pred_fallthru
        _
    $region28: #{tpu_custom_call.1} parent=5 // pred_fallthru
      _
    %p323 = scmp.le.s32.totalorder 2, %s8
    // Predicated region
    $region33: #{tpu_custom_call.1} parent=5 // pred_check
      %p324 = pneg %p323
    $region34: #{tpu_custom_call.1} parent=5 // pred_check_branch
      %326 = sbr.rel (%p324) target = $region36
    $region35: #{tpu_custom_call.1} parent=5 // pred_region
      %s327 = ssub.s32 %s8, 2
      // Predicated region
      $region37: #{tpu_custom_call.1} parent=35 // pred_check
        %p328 = pneg %p89
      $region38: #{tpu_custom_call.1} parent=35 // pred_check_branch
        %330 = sbr.rel (%p328) target = $region40
      $region39: #{tpu_custom_call.1} parent=35 // pred_region
        %s331 = smul.u32 16, %s14
        %p332 = scmp.lt.s32.totalorder %s331, 63
        %s333 = scalar_select %p332, %s331, 63
        %s334 = smul.addr %s333, 8
        %s335 = scalar_lea.vmem %s2, %s334
      $region40: #{tpu_custom_call.1} parent=35 // pred_fallthru
        _
    $region36: #{tpu_custom_call.1} parent=5 // pred_fallthru
      _
  $region6: #{tpu_custom_call.1} parent=0 // loop_footer
    %s12 = sadd.s32 1, %s8
  $region7: #{tpu_custom_call.1} parent=0 // loop_footer_branch
    %7 = sbr.rel target = $region3
  $region8: #{tpu_custom_call.1} parent=0 // loop_exit
    _

</llo_original>
